<compile_context>
chip_gen: v7x
topology: tpu7x:2x2x1
jax: 0.10.0
libtpu: 0.0.40
codegen_flags: <defaults>
</compile_context>

<pallas_src>
import functools

import jax
import jax.numpy as jnp
from jax import lax
from jax.experimental import pallas as pl
from jax.experimental.pallas import tpu as pltpu


def make_positional_encoding(d_model: int, max_len: int = 128,
                             dtype=jnp.float32) -> jnp.ndarray:
    """Replicates the PyTorch __init__ buffer exactly.

    NOTE: faithfully reproduces the module's (unusual) formula
    exp(-k * log(10000 / d_model)) for k in {0, 2, 4, ...} -- the reference divides
    inside the log, so we do too.
    """
    positions = jnp.arange(0, max_len, dtype=jnp.float32)[:, None]          # (max_len, 1)
    denominator = jnp.exp(
        -jnp.arange(0, d_model, 2, dtype=jnp.float32)
        * jnp.log(jnp.float32(10000.0) / jnp.float32(d_model))
    )                                                                        # (d_model//2,)
    angles = positions * denominator                                         # (max_len, d//2)
    pe = jnp.zeros((max_len, 1, d_model), dtype=jnp.float32)
    pe = pe.at[:, 0, 0::2].set(jnp.sin(angles))
    pe = pe.at[:, 0, 1::2].set(jnp.cos(angles))
    return pe.astype(dtype)


def _keep_mask(idx_i32, seed_i32, dropout_p: float):
    """Counter-based PRNG: murmur3 fmix32 over (global element index, seed).

    Pure jnp int32 ops (portable to Mosaic and interpret mode).  Logical right shift is
    emulated as arithmetic shift + mask.  Returns a boolean keep-mask with
    P(keep) = 1 - dropout_p (up to float32 granularity; negligible).
    """
    h = idx_i32 ^ (seed_i32 * jnp.int32(-1640531527))            # seed * 0x9E3779B9
    h = h ^ ((h >> 16) & jnp.int32(0x0000FFFF))
    h = h * jnp.int32(-2048144789)                               # 0x85EBCA6B
    h = h ^ ((h >> 13) & jnp.int32(0x0007FFFF))
    h = h * jnp.int32(-1028477387)                               # 0xC2B2AE35
    h = h ^ ((h >> 16) & jnp.int32(0x0000FFFF))
    # h is uniform over int32; map to [0, 1) and threshold.
    u = h.astype(jnp.float32) * jnp.float32(1.0 / 4294967296.0) + jnp.float32(0.5)
    return u >= jnp.float32(dropout_p)


def _apply_dropout(y, idx_i32, seed_scalar, dropout_p: float):
    if dropout_p >= 1.0:
        # Everything is dropped (matches nn.Dropout(p=1.0)); avoids inf scale.
        return jnp.zeros_like(y)
    keep = _keep_mask(idx_i32, seed_scalar, dropout_p)
    scale = jnp.asarray(1.0 / (1.0 - dropout_p), dtype=y.dtype)
    return jnp.where(keep, y * scale, jnp.zeros_like(y))


def _pe_kernel_2d(seed_ref, x_ref, pe_ref, o_ref, *,
                  batch: int, block_seq: int, dropout_p: float, training: bool):
    # Lane-dense path: x_ref (TS, B*D), pe_ref (TS, D), out (TS, B*D).
    # pe is tiled B times along lanes inside the kernel so its HBM traffic stays S*D.
    pe_row = jnp.tile(pe_ref[...], (1, batch))                   # (TS, B*D)
    y = x_ref[...] + pe_row                                      # native x.dtype compute

    if training and dropout_p > 0.0:
        ts, w = y.shape
        row = lax.broadcasted_iota(jnp.int32, (ts, w), 0) + pl.program_id(0) * block_seq
        col = lax.broadcasted_iota(jnp.int32, (ts, w), 1)
        y = _apply_dropout(y, row * jnp.int32(w) + col, seed_ref[0], dropout_p)

    o_ref[...] = y.astype(o_ref.dtype)


def _pe_kernel_3d(seed_ref, x_ref, pe_ref, o_ref, *,
                  block_seq: int, dropout_p: float, training: bool):
    # Lane-aligned path (D % 128 == 0, B % 8 == 0): x_ref (TS, B, D), pe_ref (TS, 1, D).
    y = x_ref[...] + pe_ref[...]                                 # broadcast over batch

    if training and dropout_p > 0.0:
        ts, b, d = y.shape
        s_i = lax.broadcasted_iota(jnp.int32, (ts, b, d), 0) + pl.program_id(0) * block_seq
        b_i = lax.broadcasted_iota(jnp.int32, (ts, b, d), 1)
        d_i = lax.broadcasted_iota(jnp.int32, (ts, b, d), 2)
        idx = (s_i * jnp.int32(b) + b_i) * jnp.int32(d) + d_i
        y = _apply_dropout(y, idx, seed_ref[0], dropout_p)

    o_ref[...] = y.astype(o_ref.dtype)


def positional_encoder_forward(
    x: jnp.ndarray,
    pe: jnp.ndarray,
    *,
    dropout_p: float = 0.1,
    training: bool = False,
    seed: int = 0,
    block_seq: int | None = None,
) -> jnp.ndarray:
    """x: [S, B, D]; pe: [max_len, 1, D]. Returns dropout(x + pe[:S])."""
    S, B, D = x.shape
    max_len = pe.shape[0]
    assert max_len >= S and pe.shape[2] == D

    compute_dtype = x.dtype
    if pe.dtype != compute_dtype:
        # Tiny (max_len, D)-sized convert; ideally hoisted to module init.
        pe = pe.astype(compute_dtype)

    # Tile size along the sequence axis: target ~2 MiB per x block at the REAL element
    # size; keeps 2x-buffered {x, out} + pe tiles under the scoped VMEM budget on
    # v5e/v6e/v7x while large enough to sit on the HBM roofline.
    if block_seq is None:
        row_bytes = B * D * x.dtype.itemsize
        block_seq = max(1, (2 * 1024 * 1024) // max(row_bytes, 1))
    TS = int(min(block_seq, S))
    if TS < S:
        TS = max(8, (TS // 8) * 8)       # (8, x) sublane alignment for the 2-D path
        TS = min(TS, S)
    grid = (pl.cdiv(S, TS),)

    seed_arr = jnp.asarray([seed], dtype=jnp.int32)
    compiler_params = pltpu.CompilerParams(
        dimension_semantics=("parallel",),          # no carried state across S tiles
        vmem_limit_bytes=32 * 1024 * 1024,          # portable across v5e/v6e/v7x
    )

    lane_dense = (D % 128 != 0) or (B % 8 != 0)
    if lane_dense:
        # Fold batch into the lane axis -> unmasked, full-width vector stores.
        x2 = x.reshape(S, B * D)                    # contiguous -> free reshape
        pe2 = pe.reshape(max_len, D)                # drop the size-1 batch axis
        kernel = functools.partial(
            _pe_kernel_2d, batch=B, block_seq=TS,
            dropout_p=float(dropout_p), training=bool(training))
        grid_spec = pltpu.PrefetchScalarGridSpec(
            num_scalar_prefetch=1,                  # seed lands in SMEM
            grid=grid,
            in_specs=[
                pl.BlockSpec((TS, B * D), lambda i, seed: (i, 0)),   # x tile
                pl.BlockSpec((TS, D), lambda i, seed: (i, 0)),       # pe tile (rows of full pe)
            ],
            out_specs=pl.BlockSpec((TS, B * D), lambda i, seed: (i, 0)),
        )
        out2 = pl.pallas_call(
            kernel,
            out_shape=jax.ShapeDtypeStruct((S, B * D), x.dtype),
            grid_spec=grid_spec,
            compiler_params=compiler_params,
        )(seed_arr, x2, pe2)
        return out2.reshape(S, B, D)

    kernel = functools.partial(
        _pe_kernel_3d, block_seq=TS,
        dropout_p=float(dropout_p), training=bool(training))
    grid_spec = pltpu.PrefetchScalarGridSpec(
        num_scalar_prefetch=1,
        grid=grid,
        in_specs=[
            pl.BlockSpec((TS, B, D), lambda i, seed: (i, 0, 0)),     # x tile
            pl.BlockSpec((TS, 1, D), lambda i, seed: (i, 0, 0)),     # matching pe tile
        ],
        out_specs=pl.BlockSpec((TS, B, D), lambda i, seed: (i, 0, 0)),
    )
    return pl.pallas_call(
        kernel,
        out_shape=jax.ShapeDtypeStruct((S, B, D), x.dtype),
        grid_spec=grid_spec,
        compiler_params=compiler_params,
    )(seed_arr, x, pe)


if __name__ == "__main__":
    # Small shapes consistent with the module: seq=8, batch=2, d_model=32, max_len=128.
    S, B, D, MAX_LEN = 8, 2, 32, 128
    key = jax.random.PRNGKey(0)
    x = jax.random.normal(key, (S, B, D), dtype=jnp.float32)

    pe = make_positional_encoding(D, MAX_LEN)

    # Eval-mode forward (dropout is identity in eval).
    out = positional_encoder_forward(x, pe, dropout_p=0.1, training=False)
    out = jax.block_until_ready(out)

    ref = x + pe[:S]
    assert out.shape == (S, B, D) and out.dtype == x.dtype
    assert jnp.allclose(out, ref, atol=1e-6, rtol=1e-6)

    # Training-mode forward: every element is either 0 (dropped) or (x+pe)/(1-p) (kept).
    # TODO(synk): bitwise-matching torch.nn.Dropout's RNG stream has no Pallas equivalent.
    p = 0.1
    out_tr = positional_encoder_forward(x, pe, dropout_p=p, training=True, seed=1234)
    out_tr = jax.block_until_ready(out_tr)
    scaled_ref = ref / (1.0 - p)
    kept = out_tr != 0.0                      # (x+pe exactly 0 is measure-zero for random x)
    assert out_tr.shape == (S, B, D)
    assert jnp.allclose(jnp.where(kept, out_tr, scaled_ref), scaled_ref, atol=1e-5, rtol=1e-5)
    keep_frac = float(jnp.mean(kept.astype(jnp.float32)))
    assert 0.5 < keep_frac < 1.0              # dropout actually dropped something, most kept

    print("KERNEL_OK")
</pallas_src>

<mosaic_0001>
module attributes {stable_mosaic.version = 11 : i64} {
  func.func @_pe_kernel_2d(%arg0: i32, %arg1: memref<1xi32, #tpu.memory_space<smem>>, %arg2: memref<8x64xf32, #tpu.memory_space<vmem>>, %arg3: memref<8x32xf32, #tpu.memory_space<vmem>>, %arg4: memref<8x64xf32, #tpu.memory_space<vmem>>) attributes {dimension_semantics = [#tpu.dimension_semantics<parallel>], iteration_bounds = array<i64: 1>, scalar_prefetch = 1 : i64, scratch_operands = 0 : i64, tpu.core_type = #tpu.core_type<tc>, window_params = [{transform_indices = @transform_0, window_bounds = array<i64: 8, 64>}, {transform_indices = @transform_1, window_bounds = array<i64: 8, 32>}, {transform_indices = @transform_2, window_bounds = array<i64: 8, 64>}]} {
    %c0 = arith.constant 0 : index
    %c0_0 = arith.constant 0 : index
    %0 = vector.load %arg3[%c0, %c0_0] : memref<8x32xf32, #tpu.memory_space<vmem>>, vector<8x32xf32>
    %1 = tpu.concatenate %0, %0 in 1 : vector<8x32xf32>, vector<8x32xf32> -> vector<8x64xf32>
    %c0_1 = arith.constant 0 : index
    %c0_2 = arith.constant 0 : index
    %2 = vector.load %arg2[%c0_1, %c0_2] : memref<8x64xf32, #tpu.memory_space<vmem>>, vector<8x64xf32>
    %3 = arith.addf %2, %1 : vector<8x64xf32>
    %c0_3 = arith.constant 0 : index
    %c0_4 = arith.constant 0 : index
    %4 = vector.load %arg4[%c0_3, %c0_4] : memref<8x64xf32, #tpu.memory_space<vmem>>, vector<8x64xf32>
    tpu.vector_store %arg4[%c0_3, %c0_4], %3 {strides = array<i32>} : memref<8x64xf32, #tpu.memory_space<vmem>>, vector<8x64xf32>,
    return
  }
  func.func @transform_0(%arg0: i32, %arg1: memref<1xi32, #tpu.memory_space<smem>>) -> (i32, i32) {
    %c0_i32 = arith.constant 0 : i32
    %c0_i32_0 = arith.constant 0 : i32
    return %arg0, %c0_i32 : i32, i32
  }
  func.func @transform_1(%arg0: i32, %arg1: memref<1xi32, #tpu.memory_space<smem>>) -> (i32, i32) {
    %c0_i32 = arith.constant 0 : i32
    %c0_i32_0 = arith.constant 0 : i32
    return %arg0, %c0_i32 : i32, i32
  }
  func.func @transform_2(%arg0: i32, %arg1: memref<1xi32, #tpu.memory_space<smem>>) -> (i32, i32) {
    %c0_i32 = arith.constant 0 : i32
    %c0_i32_0 = arith.constant 0 : i32
    return %arg0, %c0_i32 : i32, i32
  }
}

</mosaic_0001>

<llo_original>
// kernel: tpu_custom_call.1
$region0: #{tpu_custom_call.1}
  #allocation0 [shape = 'u32[]', space=smem, size = 0x4, offset = 0x4, fixed_abs, tag = 'smem constant byte address 0x4 - core index']
  #allocation1 [shape = 'u32[144,128]{1,0:T(1,128)}', space=vmem, size = 0x12000, scoped, tag = 'internal scratch']
  #allocation2 [shape = 's32[1]{0}', space=sflag, size = 0x4, scoped, tag = 'scoped memory for tpu_custom_call.1']
  #allocation3 [shape = 's32[1]{0:T(128)S(6)}', space=smem, size = 0x200, scoped, tag = 'prefetched SMEM operand 0']
  %s0 = inlined_call_operand.<no memory space> [shape: s32[1], index: 0, kind: input, shape index: {}]
  %s1 = inlined_call_operand.vmem [shape: f32[8,64], index: 1, kind: input, shape index: {}]
  %s2 = inlined_call_operand.vmem [shape: f32[128,32], index: 2, kind: input, shape index: {}]
  %s3 = inlined_call_operand.hbm [shape: f32[8,64], index: 3, kind: output, shape index: {}]
  %s4 = sld [smem:[#allocation0]]
  $region18: #{tpu_custom_call.1} parent=0
    _
  %s6 = ssub.s32 1, %s4
  %s7 = scalar_select 0, %s6, %s4
  %8 = sst [smem:[#allocation3]] %s0
  $region1: #{tpu_custom_call.1} parent=0
    #allocation4 [shape = 'u8[4096]{0}', space=vmem, size = 0x1000, scoped, tag = 'output window, operand 0, single buffered']
    #allocation5 [shape = 's32[1]{0}', space=sflag, size = 0x4, scoped, tag = 'scoped memory for tpu_custom_call.1']
    %9 = vsyncpa [#allocation5], 0
    // Predicated region
    $region2: #{tpu_custom_call.1} parent=1 // pred_check
      _
    $region3: #{tpu_custom_call.1} parent=1 // pred_check_branch
      %11 = sbr.rel (0) target = $region5
    $region4: #{tpu_custom_call.1} parent=1 // pred_region
      _
    $region5: #{tpu_custom_call.1} parent=1 // pred_fallthru
      _
    // Predicated region
    $region6: #{tpu_custom_call.1} parent=1 // pred_check
      _
    $region7: #{tpu_custom_call.1} parent=1 // pred_check_branch
      %13 = sbr.rel (0) target = $region9
    $region8: #{tpu_custom_call.1} parent=1 // pred_region
      _
    $region9: #{tpu_custom_call.1} parent=1 // pred_fallthru
      _
    %v14 = vld [vmem:[%s2] sm:$0xff]
    %16 = vrot.lane.b32.xlu0 %v14, 32
    %v17 = vpop.permute.xlu0 %16
    %vm19 = vcmask 261120
    %v20 = vsel %vm19, %v14, %v17
    %v21 = vld [vmem:[%s1] sm:$0xff]
    %v22 = vadd.f32 %v21, %v20
    %vm23 = vcmask 523264
    %24 = vst.msk [vmem:[#allocation4] sm:$0xff] %vm23, %v22
    // Predicated region
    $region10: #{tpu_custom_call.1} parent=1 // pred_check
      _
    $region11: #{tpu_custom_call.1} parent=1 // pred_check_branch
      %26 = sbr.rel (0) target = $region13
    $region12: #{tpu_custom_call.1} parent=1 // pred_region
      %s28 = ssub.s32 128, 128
      %29 = vsyncadd [#allocation5], %s28
      %s31 = sshll.u32 [#allocation4], 4
      %s32 = int_to_ptr.vmem [resolvable:$true] %s31
      %34 = dma.vmem_to_hbm [thread:$0]  %s32, 128, %s3, [#allocation5]
    $region13: #{tpu_custom_call.1} parent=1 // pred_fallthru
      _
    // Predicated region
    $region14: #{tpu_custom_call.1} parent=1 // pred_check
      _
    $region15: #{tpu_custom_call.1} parent=1 // pred_check_branch
      %36 = sbr.rel (0) target = $region17
    $region16: #{tpu_custom_call.1} parent=1 // pred_region
      %37 = dma.done [#allocation5], 128
    $region17: #{tpu_custom_call.1} parent=1 // pred_fallthru
      _
    %38 = vsyncpa [#allocation5], 1

</llo_original>
